<compile_context>
chip_gen: v7x
topology: tpu7x:2x2x1
jax: 0.10.0
libtpu: 0.0.40
codegen_flags: <defaults>
</compile_context>

<pallas_src>
import jax
import jax.numpy as jnp
from jax import lax
from jax.experimental import pallas as pl
from jax.experimental.pallas import tpu as pltpu


# -----------------------------------------------------------------------------
# Fused kernel
# -----------------------------------------------------------------------------
def _fused_subgraph_kernel(
    row_t_ref, col_t_ref,        # tree_edge_index         (E1,1) / (1,E1) int32
    row_a_ref, col_a_ref,        # atom2clique_index       (E2,1) / (1,E2) int32
    tb_ref,                      # tree_batch              (n_clique,1) int32
    x_ref, xc_ref, u_ref,        # features, bf16
    w_ref,                       # (4,H,H) bf16: m1w1, m1w2, m2w1, m2w2  ([in,out])
    sw1_ref,                     # (4,H,H) bf16: subgraph lin1 row blocks
    sw2_ref,                     # (H,O)   bf16: subgraph lin2
    b_ref,                       # (5,H)   f32 : m1b1, m1b2, m2b1, m2b2, sb1
    sb2_ref,                     # (1,O)   f32
    o_ref,                       # (n_clique, O) f32
):
    f32, bf16 = jnp.float32, jnp.bfloat16

    n_clique = xc_ref.shape[0]
    n_atoms = x_ref.shape[0]
    num_graphs = u_ref.shape[0]

    x = x_ref[...]
    xc = xc_ref[...]
    u = u_ref[...]

    def onehot(idx, n, axis):
        # axis=1: idx is (rows,1)  -> (rows, n)   mask[r, j] = (idx[r] == j)
        # axis=0: idx is (1,cols)  -> (n, cols)   mask[i, c] = (idx[c] == i)
        shape = (idx.shape[0], n) if axis == 1 else (n, idx.shape[1])
        eye = lax.broadcasted_iota(jnp.int32, shape, axis)
        return jnp.where(idx == eye, 1.0, 0.0).astype(bf16)

    def mlp(h, w1, b1, w2, b2):
        # dropout is identity (eval mode)
        a = jnp.maximum(
            jnp.dot(h.astype(bf16), w1, preferred_element_type=f32) + b1, 0.0)
        return jnp.dot(a.astype(bf16), w2, preferred_element_type=f32) + b2

    # --- out = mlp1( scatter_sum(x_clique[row], col, dim_size=n_clique) ) ----
    gather1 = onehot(row_t_ref[...], n_clique, 1)           # (E1, n_clique)
    scatter1 = onehot(col_t_ref[...], n_clique, 0)          # (n_clique, E1)
    picked1 = jnp.dot(gather1, xc, preferred_element_type=f32)   # x_clique[row]
    agg1 = jnp.dot(scatter1, picked1.astype(bf16), preferred_element_type=f32)
    out1 = mlp(agg1, w_ref[0], b_ref[0:1, :], w_ref[1], b_ref[1:2, :])

    # --- node_info = mlp2( scatter_sum(x[row_assign], col_assign) ) ----------
    gather2 = onehot(row_a_ref[...], n_atoms, 1)             # (E2, n_atoms)
    scatter2 = onehot(col_a_ref[...], n_clique, 0)           # (n_clique, E2)
    picked2 = jnp.dot(gather2, x, preferred_element_type=f32)    # x[row_assign]
    agg2 = jnp.dot(scatter2, picked2.astype(bf16), preferred_element_type=f32)
    node_info = mlp(agg2, w_ref[2], b_ref[2:3, :], w_ref[3], b_ref[3:4, :])

    # --- u_g = u[tree_batch] -------------------------------------------------
    gmask = onehot(tb_ref[...], num_graphs, 1)               # (n_clique, G)
    u_g = jnp.dot(gmask, u, preferred_element_type=f32)

    # --- subgraph_mlp( cat([node_info, x_clique, out1, u_g], axis=1) ) -------
    # Concat-free: lin1 weight split into four [H,H] row blocks; the first
    # layer is a sum of four MXU dots (no cross-lane data movement).
    h3 = (
        jnp.dot(node_info.astype(bf16), sw1_ref[0], preferred_element_type=f32)
        + jnp.dot(xc, sw1_ref[1], preferred_element_type=f32)
        + jnp.dot(out1.astype(bf16), sw1_ref[2], preferred_element_type=f32)
        + jnp.dot(u_g.astype(bf16), sw1_ref[3], preferred_element_type=f32)
        + b_ref[4:5, :]
    )
    h3 = jnp.maximum(h3, 0.0)
    # Output is (n_clique, out_dim); at toy sizes the <128-lane store is
    # negligible — pad out_dim to 128 if these dims ever grow.
    o_ref[...] = (
        jnp.dot(h3.astype(bf16), sw2_ref[...], preferred_element_type=f32)
        + sb2_ref[...]
    )


# -----------------------------------------------------------------------------
# Wrapper
# -----------------------------------------------------------------------------
_VMEM = pl.BlockSpec(memory_space=pltpu.MemorySpace.VMEM)


def subgraph_model_ml2_forward(params, x, x_clique, tree_edge_index,
                               atom2clique_index, u, tree_batch):
    n_clique, hidden = x_clique.shape
    n_atoms = x.shape[0]
    num_graphs = u.shape[0]
    e_tree = tree_edge_index.shape[1]
    e_a2c = atom2clique_index.shape[1]
    out_dim = params["sw2"].shape[1]

    # Raw int32 indices (2-D so the kernel can broadcast-compare against iota).
    row_t = tree_edge_index[0].astype(jnp.int32).reshape(e_tree, 1)
    col_t = tree_edge_index[1].astype(jnp.int32).reshape(1, e_tree)
    row_a = atom2clique_index[0].astype(jnp.int32).reshape(e_a2c, 1)
    col_a = atom2clique_index[1].astype(jnp.int32).reshape(1, e_a2c)
    tb = tree_batch.astype(jnp.int32).reshape(n_clique, 1)

    x_bf = x.astype(jnp.bfloat16)
    xc_bf = x_clique.astype(jnp.bfloat16)
    u_bf = u.astype(jnp.bfloat16)

    operands = (
        row_t, col_t, row_a, col_a, tb,
        x_bf, xc_bf, u_bf,
        params["w_stack"], params["sw1_stack"], params["sw2"],
        params["b_stack"], params["sb2"],
    )

    h = hidden
    flops = 2 * (
        e_tree * n_clique * h + n_clique * e_tree * h     # tree gather + scatter
        + e_a2c * n_atoms * h + n_clique * e_a2c * h      # atom2clique
        + n_clique * num_graphs * h                       # u[tree_batch]
        + 4 * n_clique * h * h                            # mlp1 + mlp2
        + 4 * n_clique * h * h                            # subgraph lin1 blocks
        + n_clique * h * out_dim                          # subgraph lin2
    )
    bytes_accessed = sum(a.size * a.dtype.itemsize for a in operands) \
        + n_clique * out_dim * 4

    return pl.pallas_call(
        _fused_subgraph_kernel,
        out_shape=jax.ShapeDtypeStruct((n_clique, out_dim), jnp.float32),
        in_specs=[_VMEM] * len(operands),
        out_specs=_VMEM,
        cost_estimate=pl.CostEstimate(
            flops=flops, transcendentals=0, bytes_accessed=bytes_accessed),
    )(*operands)


# -----------------------------------------------------------------------------
# Parameter init (PyTorch nn.Linear style: U(-1/sqrt(in), 1/sqrt(in))).
# Weights are stored PRE-TRANSPOSED as [in, out] and pre-packed / pre-cast to
# bf16 at init time, so no per-call XLA packing or transpose ops are emitted.
# -----------------------------------------------------------------------------
def _init_linear(key, in_dim, out_dim):
    k_w, k_b = jax.random.split(key)
    bound = 1.0 / (in_dim ** 0.5)
    w = jax.random.uniform(k_w, (in_dim, out_dim), jnp.float32, -bound, bound)
    b = jax.random.uniform(k_b, (out_dim,), jnp.float32, -bound, bound)
    return w, b


def init_params(key, hidden_dim, output_dim):
    ks = jax.random.split(key, 6)
    m1w1, m1b1 = _init_linear(ks[0], hidden_dim, hidden_dim)
    m1w2, m1b2 = _init_linear(ks[1], hidden_dim, hidden_dim)
    m2w1, m2b1 = _init_linear(ks[2], hidden_dim, hidden_dim)
    m2w2, m2b2 = _init_linear(ks[3], hidden_dim, hidden_dim)
    sw1, sb1 = _init_linear(ks[4], 4 * hidden_dim, hidden_dim)
    sw2, sb2 = _init_linear(ks[5], hidden_dim, output_dim)

    raw = {
        "mlp1": (m1w1, m1b1, m1w2, m1b2),
        "mlp2": (m2w1, m2b1, m2w2, m2b2),
        "subgraph": (sw1, sb1, sw2, sb2),
    }

    H = hidden_dim
    packed = {
        "w_stack": jnp.stack([m1w1, m1w2, m2w1, m2w2]).astype(jnp.bfloat16),
        "sw1_stack": jnp.stack(
            [sw1[0:H], sw1[H:2 * H], sw1[2 * H:3 * H], sw1[3 * H:4 * H]]
        ).astype(jnp.bfloat16),
        "sw2": sw2.astype(jnp.bfloat16),
        "b_stack": jnp.stack([m1b1, m1b2, m2b1, m2b2, sb1]),   # (5, H) f32
        "sb2": sb2.reshape(1, output_dim),                     # (1, O) f32
    }
    return raw, packed


# -----------------------------------------------------------------------------
# Pure-JAX f32 reference (mirrors the PyTorch module, eval mode).
# -----------------------------------------------------------------------------
def reference_forward(raw, x, x_clique, tree_edge_index, atom2clique_index, u,
                      tree_batch):
    m1w1, m1b1, m1w2, m1b2 = raw["mlp1"]
    m2w1, m2b1, m2w2, m2b2 = raw["mlp2"]
    sw1, sb1, sw2, sb2 = raw["subgraph"]
    n_clique, H = x_clique.shape

    def mlp(h, w1, b1, w2, b2):
        return jnp.maximum(h @ w1 + b1, 0.0) @ w2 + b2

    row, col = tree_edge_index
    out = jnp.zeros((n_clique, H), jnp.float32).at[col].add(x_clique[row])
    out = mlp(out, m1w1, m1b1, m1w2, m1b2)

    row_a, col_a = atom2clique_index
    node_info = jnp.zeros((n_clique, H), jnp.float32).at[col_a].add(x[row_a])
    node_info = mlp(node_info, m2w1, m2b1, m2w2, m2b2)

    cat = jnp.concatenate([node_info, x_clique, out, u[tree_batch]], axis=1)
    return mlp(cat, sw1, sb1, sw2, sb2)


# -----------------------------------------------------------------------------
# Main
# -----------------------------------------------------------------------------
if __name__ == "__main__":
    hidden_dim = 32
    output_dim = 16
    n_atoms = 12
    n_clique = 8
    n_tree_edges = 14
    n_a2c_edges = 12
    num_graphs = 2

    key = jax.random.PRNGKey(0)
    keys = jax.random.split(key, 9)

    x = jax.random.normal(keys[0], (n_atoms, hidden_dim), jnp.float32)
    x_clique = jax.random.normal(keys[1], (n_clique, hidden_dim), jnp.float32)
    u = jax.random.normal(keys[2], (num_graphs, hidden_dim), jnp.float32)

    tree_edge_index = jnp.stack([
        jax.random.randint(keys[3], (n_tree_edges,), 0, n_clique),
        jax.random.randint(keys[4], (n_tree_edges,), 0, n_clique),
    ])
    atom2clique_index = jnp.stack([
        jax.random.randint(keys[5], (n_a2c_edges,), 0, n_atoms),
        jax.random.randint(keys[6], (n_a2c_edges,), 0, n_clique),
    ])
    tree_batch = jnp.sort(
        jax.random.randint(keys[7], (n_clique,), 0, num_graphs))

    raw_params, packed_params = init_params(keys[8], hidden_dim, output_dim)

    fwd = jax.jit(subgraph_model_ml2_forward)
    result = fwd(packed_params, x, x_clique, tree_edge_index,
                 atom2clique_index, u, tree_batch)
    jax.block_until_ready(result)

    assert result.shape == (n_clique, output_dim)
    assert result.dtype == jnp.float32

    # Loose correctness check vs f32 reference (kernel uses bf16 weights/acts).
    ref = reference_forward(raw_params, x, x_clique, tree_edge_index,
                            atom2clique_index, u, tree_batch)
    max_err = float(jnp.max(jnp.abs(result - ref)))
    assert max_err < 1e-1, f"max abs error vs reference too large: {max_err}"

    print("KERNEL_OK")
</pallas_src>

<mosaic_0001>
module attributes {stable_mosaic.version = 11 : i64} {
  func.func @_fused_subgraph_kernel(%arg0: memref<14x1xi32, #tpu.memory_space<vmem>>, %arg1: memref<1x14xi32, #tpu.memory_space<vmem>>, %arg2: memref<12x1xi32, #tpu.memory_space<vmem>>, %arg3: memref<1x12xi32, #tpu.memory_space<vmem>>, %arg4: memref<8x1xi32, #tpu.memory_space<vmem>>, %arg5: memref<12x32xbf16, #tpu.memory_space<vmem>>, %arg6: memref<8x32xbf16, #tpu.memory_space<vmem>>, %arg7: memref<2x32xbf16, #tpu.memory_space<vmem>>, %arg8: memref<4x32x32xbf16, #tpu.memory_space<vmem>>, %arg9: memref<4x32x32xbf16, #tpu.memory_space<vmem>>, %arg10: memref<32x16xbf16, #tpu.memory_space<vmem>>, %arg11: memref<5x32xf32, #tpu.memory_space<vmem>>, %arg12: memref<1x16xf32, #tpu.memory_space<vmem>>, %arg13: memref<8x16xf32, #tpu.memory_space<vmem>>) attributes {dimension_semantics = [], scalar_prefetch = 0 : i64, scratch_operands = 0 : i64, tpu.core_type = #tpu.core_type<tc>} {
    %c0 = arith.constant 0 : index
    %c0_0 = arith.constant 0 : index
    %0 = vector.load %arg5[%c0, %c0_0] : memref<12x32xbf16, #tpu.memory_space<vmem>>, vector<12x32xbf16>
    %c0_1 = arith.constant 0 : index
    %c0_2 = arith.constant 0 : index
    %1 = vector.load %arg6[%c0_1, %c0_2] : memref<8x32xbf16, #tpu.memory_space<vmem>>, vector<8x32xbf16>
    %c0_3 = arith.constant 0 : index
    %c0_4 = arith.constant 0 : index
    %2 = vector.load %arg7[%c0_3, %c0_4] : memref<2x32xbf16, #tpu.memory_space<vmem>>, vector<2x32xbf16>
    %c0_5 = arith.constant 0 : index
    %c0_6 = arith.constant 0 : index
    %3 = vector.load %arg0[%c0_5, %c0_6] : memref<14x1xi32, #tpu.memory_space<vmem>>, vector<14x1xi32>
    %4 = tpu.iota {dimensions = array<i32: 1>} : vector<14x8xi32>
    %5 = vector.broadcast %3 : vector<14x1xi32> to vector<14x8xi32>
    %6 = arith.cmpi eq, %5, %4 : vector<14x8xi32>
    %cst = arith.constant 1.000000e+00 : f32
    %cst_7 = arith.constant 0.000000e+00 : f32
    %7 = vector.broadcast %cst : f32 to vector<14x8xf32>
    %8 = vector.broadcast %cst_7 : f32 to vector<14x8xf32>
    %9 = arith.select %6, %7, %8 : vector<14x8xi1>, vector<14x8xf32>
    %10 = arith.truncf %9 : vector<14x8xf32> to vector<14x8xbf16>
    %c0_8 = arith.constant 0 : index
    %c0_9 = arith.constant 0 : index
    %11 = vector.load %arg1[%c0_8, %c0_9] : memref<1x14xi32, #tpu.memory_space<vmem>>, vector<1x14xi32>
    %12 = tpu.iota {dimensions = array<i32: 0>} : vector<8x14xi32>
    %13 = vector.broadcast %11 : vector<1x14xi32> to vector<8x14xi32>
    %14 = arith.cmpi eq, %13, %12 : vector<8x14xi32>
    %cst_10 = arith.constant 1.000000e+00 : f32
    %cst_11 = arith.constant 0.000000e+00 : f32
    %15 = vector.broadcast %cst_10 : f32 to vector<8x14xf32>
    %16 = vector.broadcast %cst_11 : f32 to vector<8x14xf32>
    %17 = arith.select %14, %15, %16 : vector<8x14xi1>, vector<8x14xf32>
    %18 = arith.truncf %17 : vector<8x14xf32> to vector<8x14xbf16>
    %cst_12 = arith.constant dense<0.000000e+00> : vector<14x32xf32>
    %19 = tpu.matmul %10, %1, %cst_12 {dimension_numbers = #tpu.dot_dimension_numbers<[1], [0], [0], [1], [0, 0, 1, 1], [], []>} : vector<14x8xbf16>, vector<8x32xbf16>, vector<14x32xf32> -> vector<14x32xf32>
    %20 = arith.truncf %19 : vector<14x32xf32> to vector<14x32xbf16>
    %cst_13 = arith.constant dense<0.000000e+00> : vector<8x32xf32>
    %21 = tpu.matmul %18, %20, %cst_13 {dimension_numbers = #tpu.dot_dimension_numbers<[1], [0], [0], [1], [0, 0, 1, 1], [], []>} : vector<8x14xbf16>, vector<14x32xbf16>, vector<8x32xf32> -> vector<8x32xf32>
    %c0_14 = arith.constant 0 : index
    %c0_15 = arith.constant 0 : index
    %c0_16 = arith.constant 0 : index
    %22 = vector.load %arg8[%c0_14, %c0_15, %c0_16] : memref<4x32x32xbf16, #tpu.memory_space<vmem>>, vector<1x32x32xbf16>
    %23 = vector.shape_cast %22 : vector<1x32x32xbf16> to vector<32x32xbf16>
    %c0_17 = arith.constant 0 : index
    %c0_18 = arith.constant 0 : index
    %24 = vector.load %arg11[%c0_17, %c0_18] : memref<5x32xf32, #tpu.memory_space<vmem>>, vector<1x32xf32>
    %c1 = arith.constant 1 : index
    %c0_19 = arith.constant 0 : index
    %c0_20 = arith.constant 0 : index
    %25 = vector.load %arg8[%c1, %c0_19, %c0_20] : memref<4x32x32xbf16, #tpu.memory_space<vmem>>, vector<1x32x32xbf16>
    %26 = vector.shape_cast %25 : vector<1x32x32xbf16> to vector<32x32xbf16>
    %c1_21 = arith.constant 1 : index
    %c0_22 = arith.constant 0 : index
    %27 = vector.load %arg11[%c1_21, %c0_22] : memref<5x32xf32, #tpu.memory_space<vmem>>, vector<1x32xf32>
    %28 = arith.truncf %21 : vector<8x32xf32> to vector<8x32xbf16>
    %cst_23 = arith.constant dense<0.000000e+00> : vector<8x32xf32>
    %29 = tpu.matmul %28, %23, %cst_23 {dimension_numbers = #tpu.dot_dimension_numbers<[1], [0], [0], [1], [0, 0, 1, 1], [], []>} : vector<8x32xbf16>, vector<32x32xbf16>, vector<8x32xf32> -> vector<8x32xf32>
    %30 = vector.broadcast %24 : vector<1x32xf32> to vector<8x32xf32>
    %31 = arith.addf %29, %30 : vector<8x32xf32>
    %cst_24 = arith.constant 0.000000e+00 : f32
    %32 = vector.broadcast %cst_24 : f32 to vector<8x32xf32>
    %33 = arith.maximumf %31, %32 : vector<8x32xf32>
    %34 = arith.truncf %33 : vector<8x32xf32> to vector<8x32xbf16>
    %cst_25 = arith.constant dense<0.000000e+00> : vector<8x32xf32>
    %35 = tpu.matmul %34, %26, %cst_25 {dimension_numbers = #tpu.dot_dimension_numbers<[1], [0], [0], [1], [0, 0, 1, 1], [], []>} : vector<8x32xbf16>, vector<32x32xbf16>, vector<8x32xf32> -> vector<8x32xf32>
    %36 = vector.broadcast %27 : vector<1x32xf32> to vector<8x32xf32>
    %37 = arith.addf %35, %36 : vector<8x32xf32>
    %c0_26 = arith.constant 0 : index
    %c0_27 = arith.constant 0 : index
    %38 = vector.load %arg2[%c0_26, %c0_27] : memref<12x1xi32, #tpu.memory_space<vmem>>, vector<12x1xi32>
    %39 = tpu.iota {dimensions = array<i32: 1>} : vector<12x12xi32>
    %40 = vector.broadcast %38 : vector<12x1xi32> to vector<12x12xi32>
    %41 = arith.cmpi eq, %40, %39 : vector<12x12xi32>
    %cst_28 = arith.constant 1.000000e+00 : f32
    %cst_29 = arith.constant 0.000000e+00 : f32
    %42 = vector.broadcast %cst_28 : f32 to vector<12x12xf32>
    %43 = vector.broadcast %cst_29 : f32 to vector<12x12xf32>
    %44 = arith.select %41, %42, %43 : vector<12x12xi1>, vector<12x12xf32>
    %45 = arith.truncf %44 : vector<12x12xf32> to vector<12x12xbf16>
    %c0_30 = arith.constant 0 : index
    %c0_31 = arith.constant 0 : index
    %46 = vector.load %arg3[%c0_30, %c0_31] : memref<1x12xi32, #tpu.memory_space<vmem>>, vector<1x12xi32>
    %47 = tpu.iota {dimensions = array<i32: 0>} : vector<8x12xi32>
    %48 = vector.broadcast %46 : vector<1x12xi32> to vector<8x12xi32>
    %49 = arith.cmpi eq, %48, %47 : vector<8x12xi32>
    %cst_32 = arith.constant 1.000000e+00 : f32
    %cst_33 = arith.constant 0.000000e+00 : f32
    %50 = vector.broadcast %cst_32 : f32 to vector<8x12xf32>
    %51 = vector.broadcast %cst_33 : f32 to vector<8x12xf32>
    %52 = arith.select %49, %50, %51 : vector<8x12xi1>, vector<8x12xf32>
    %53 = arith.truncf %52 : vector<8x12xf32> to vector<8x12xbf16>
    %cst_34 = arith.constant dense<0.000000e+00> : vector<12x32xf32>
    %54 = tpu.matmul %45, %0, %cst_34 {dimension_numbers = #tpu.dot_dimension_numbers<[1], [0], [0], [1], [0, 0, 1, 1], [], []>} : vector<12x12xbf16>, vector<12x32xbf16>, vector<12x32xf32> -> vector<12x32xf32>
    %55 = arith.truncf %54 : vector<12x32xf32> to vector<12x32xbf16>
    %cst_35 = arith.constant dense<0.000000e+00> : vector<8x32xf32>
    %56 = tpu.matmul %53, %55, %cst_35 {dimension_numbers = #tpu.dot_dimension_numbers<[1], [0], [0], [1], [0, 0, 1, 1], [], []>} : vector<8x12xbf16>, vector<12x32xbf16>, vector<8x32xf32> -> vector<8x32xf32>
    %c2 = arith.constant 2 : index
    %c0_36 = arith.constant 0 : index
    %c0_37 = arith.constant 0 : index
    %57 = vector.load %arg8[%c2, %c0_36, %c0_37] : memref<4x32x32xbf16, #tpu.memory_space<vmem>>, vector<1x32x32xbf16>
    %58 = vector.shape_cast %57 : vector<1x32x32xbf16> to vector<32x32xbf16>
    %c2_38 = arith.constant 2 : index
    %c0_39 = arith.constant 0 : index
    %59 = vector.load %arg11[%c2_38, %c0_39] : memref<5x32xf32, #tpu.memory_space<vmem>>, vector<1x32xf32>
    %c3 = arith.constant 3 : index
    %c0_40 = arith.constant 0 : index
    %c0_41 = arith.constant 0 : index
    %60 = vector.load %arg8[%c3, %c0_40, %c0_41] : memref<4x32x32xbf16, #tpu.memory_space<vmem>>, vector<1x32x32xbf16>
    %61 = vector.shape_cast %60 : vector<1x32x32xbf16> to vector<32x32xbf16>
    %c3_42 = arith.constant 3 : index
    %c0_43 = arith.constant 0 : index
    %62 = vector.load %arg11[%c3_42, %c0_43] : memref<5x32xf32, #tpu.memory_space<vmem>>, vector<1x32xf32>
    %63 = arith.truncf %56 : vector<8x32xf32> to vector<8x32xbf16>
    %cst_44 = arith.constant dense<0.000000e+00> : vector<8x32xf32>
    %64 = tpu.matmul %63, %58, %cst_44 {dimension_numbers = #tpu.dot_dimension_numbers<[1], [0], [0], [1], [0, 0, 1, 1], [], []>} : vector<8x32xbf16>, vector<32x32xbf16>, vector<8x32xf32> -> vector<8x32xf32>
    %65 = vector.broadcast %59 : vector<1x32xf32> to vector<8x32xf32>
    %66 = arith.addf %64, %65 : vector<8x32xf32>
    %cst_45 = arith.constant 0.000000e+00 : f32
    %67 = vector.broadcast %cst_45 : f32 to vector<8x32xf32>
    %68 = arith.maximumf %66, %67 : vector<8x32xf32>
    %69 = arith.truncf %68 : vector<8x32xf32> to vector<8x32xbf16>
    %cst_46 = arith.constant dense<0.000000e+00> : vector<8x32xf32>
    %70 = tpu.matmul %69, %61, %cst_46 {dimension_numbers = #tpu.dot_dimension_numbers<[1], [0], [0], [1], [0, 0, 1, 1], [], []>} : vector<8x32xbf16>, vector<32x32xbf16>, vector<8x32xf32> -> vector<8x32xf32>
    %71 = vector.broadcast %62 : vector<1x32xf32> to vector<8x32xf32>
    %72 = arith.addf %70, %71 : vector<8x32xf32>
    %c0_47 = arith.constant 0 : index
    %c0_48 = arith.constant 0 : index
    %73 = vector.load %arg4[%c0_47, %c0_48] : memref<8x1xi32, #tpu.memory_space<vmem>>, vector<8x1xi32>
    %74 = tpu.iota {dimensions = array<i32: 1>} : vector<8x2xi32>
    %75 = vector.broadcast %73 : vector<8x1xi32> to vector<8x2xi32>
    %76 = arith.cmpi eq, %75, %74 : vector<8x2xi32>
    %cst_49 = arith.constant 1.000000e+00 : f32
    %cst_50 = arith.constant 0.000000e+00 : f32
    %77 = vector.broadcast %cst_49 : f32 to vector<8x2xf32>
    %78 = vector.broadcast %cst_50 : f32 to vector<8x2xf32>
    %79 = arith.select %76, %77, %78 : vector<8x2xi1>, vector<8x2xf32>
    %80 = arith.truncf %79 : vector<8x2xf32> to vector<8x2xbf16>
    %cst_51 = arith.constant dense<0.000000e+00> : vector<8x32xf32>
    %81 = tpu.matmul %80, %2, %cst_51 {dimension_numbers = #tpu.dot_dimension_numbers<[1], [0], [0], [1], [0, 0, 1, 1], [], []>} : vector<8x2xbf16>, vector<2x32xbf16>, vector<8x32xf32> -> vector<8x32xf32>
    %82 = arith.truncf %72 : vector<8x32xf32> to vector<8x32xbf16>
    %c0_52 = arith.constant 0 : index
    %c0_53 = arith.constant 0 : index
    %c0_54 = arith.constant 0 : index
    %83 = vector.load %arg9[%c0_52, %c0_53, %c0_54] : memref<4x32x32xbf16, #tpu.memory_space<vmem>>, vector<1x32x32xbf16>
    %84 = vector.shape_cast %83 : vector<1x32x32xbf16> to vector<32x32xbf16>
    %cst_55 = arith.constant dense<0.000000e+00> : vector<8x32xf32>
    %85 = tpu.matmul %82, %84, %cst_55 {dimension_numbers = #tpu.dot_dimension_numbers<[1], [0], [0], [1], [0, 0, 1, 1], [], []>} : vector<8x32xbf16>, vector<32x32xbf16>, vector<8x32xf32> -> vector<8x32xf32>
    %c1_56 = arith.constant 1 : index
    %c0_57 = arith.constant 0 : index
    %c0_58 = arith.constant 0 : index
    %86 = vector.load %arg9[%c1_56, %c0_57, %c0_58] : memref<4x32x32xbf16, #tpu.memory_space<vmem>>, vector<1x32x32xbf16>
    %87 = vector.shape_cast %86 : vector<1x32x32xbf16> to vector<32x32xbf16>
    %cst_59 = arith.constant dense<0.000000e+00> : vector<8x32xf32>
    %88 = tpu.matmul %1, %87, %cst_59 {dimension_numbers = #tpu.dot_dimension_numbers<[1], [0], [0], [1], [0, 0, 1, 1], [], []>} : vector<8x32xbf16>, vector<32x32xbf16>, vector<8x32xf32> -> vector<8x32xf32>
    %89 = arith.addf %85, %88 : vector<8x32xf32>
    %90 = arith.truncf %37 : vector<8x32xf32> to vector<8x32xbf16>
    %c2_60 = arith.constant 2 : index
    %c0_61 = arith.constant 0 : index
    %c0_62 = arith.constant 0 : index
    %91 = vector.load %arg9[%c2_60, %c0_61, %c0_62] : memref<4x32x32xbf16, #tpu.memory_space<vmem>>, vector<1x32x32xbf16>
    %92 = vector.shape_cast %91 : vector<1x32x32xbf16> to vector<32x32xbf16>
    %cst_63 = arith.constant dense<0.000000e+00> : vector<8x32xf32>
    %93 = tpu.matmul %90, %92, %cst_63 {dimension_numbers = #tpu.dot_dimension_numbers<[1], [0], [0], [1], [0, 0, 1, 1], [], []>} : vector<8x32xbf16>, vector<32x32xbf16>, vector<8x32xf32> -> vector<8x32xf32>
    %94 = arith.addf %89, %93 : vector<8x32xf32>
    %95 = arith.truncf %81 : vector<8x32xf32> to vector<8x32xbf16>
    %c3_64 = arith.constant 3 : index
    %c0_65 = arith.constant 0 : index
    %c0_66 = arith.constant 0 : index
    %96 = vector.load %arg9[%c3_64, %c0_65, %c0_66] : memref<4x32x32xbf16, #tpu.memory_space<vmem>>, vector<1x32x32xbf16>
    %97 = vector.shape_cast %96 : vector<1x32x32xbf16> to vector<32x32xbf16>
    %cst_67 = arith.constant dense<0.000000e+00> : vector<8x32xf32>
    %98 = tpu.matmul %95, %97, %cst_67 {dimension_numbers = #tpu.dot_dimension_numbers<[1], [0], [0], [1], [0, 0, 1, 1], [], []>} : vector<8x32xbf16>, vector<32x32xbf16>, vector<8x32xf32> -> vector<8x32xf32>
    %99 = arith.addf %94, %98 : vector<8x32xf32>
    %c4 = arith.constant 4 : index
    %c0_68 = arith.constant 0 : index
    %100 = vector.load %arg11[%c4, %c0_68] : memref<5x32xf32, #tpu.memory_space<vmem>>, vector<1x32xf32>
    %101 = vector.broadcast %100 : vector<1x32xf32> to vector<8x32xf32>
    %102 = arith.addf %99, %101 : vector<8x32xf32>
    %cst_69 = arith.constant 0.000000e+00 : f32
    %103 = vector.broadcast %cst_69 : f32 to vector<8x32xf32>
    %104 = arith.maximumf %102, %103 : vector<8x32xf32>
    %105 = arith.truncf %104 : vector<8x32xf32> to vector<8x32xbf16>
    %c0_70 = arith.constant 0 : index
    %c0_71 = arith.constant 0 : index
    %106 = vector.load %arg10[%c0_70, %c0_71] : memref<32x16xbf16, #tpu.memory_space<vmem>>, vector<32x16xbf16>
    %cst_72 = arith.constant dense<0.000000e+00> : vector<8x16xf32>
    %107 = tpu.matmul %105, %106, %cst_72 {dimension_numbers = #tpu.dot_dimension_numbers<[1], [0], [0], [1], [0, 0, 1, 1], [], []>} : vector<8x32xbf16>, vector<32x16xbf16>, vector<8x16xf32> -> vector<8x16xf32>
    %c0_73 = arith.constant 0 : index
    %c0_74 = arith.constant 0 : index
    %108 = vector.load %arg12[%c0_73, %c0_74] : memref<1x16xf32, #tpu.memory_space<vmem>>, vector<1x16xf32>
    %109 = vector.broadcast %108 : vector<1x16xf32> to vector<8x16xf32>
    %110 = arith.addf %107, %109 : vector<8x16xf32>
    %c0_75 = arith.constant 0 : index
    %c0_76 = arith.constant 0 : index
    %111 = vector.load %arg13[%c0_75, %c0_76] : memref<8x16xf32, #tpu.memory_space<vmem>>, vector<8x16xf32>
    tpu.vector_store %arg13[%c0_75, %c0_76], %110 {strides = array<i32>} : memref<8x16xf32, #tpu.memory_space<vmem>>, vector<8x16xf32>,
    return
  }
}

</mosaic_0001>

<llo_original>
// kernel: subgraph_model_ml2_forward.1
$region0: #{subgraph_model_ml2_forward.1}
  #allocation0 [shape = 'u32[]', space=smem, size = 0x4, offset = 0x4, fixed_abs, tag = 'smem constant byte address 0x4 - core index']
  #allocation1 [shape = 'u32[144,128]{1,0:T(1,128)}', space=vmem, size = 0x12000, scoped, tag = 'internal scratch']
  %s0 = inlined_call_operand.vmem [shape: s32[14,1], index: 0, kind: input, shape index: {}]
  %s1 = inlined_call_operand.vmem [shape: s32[1,14], index: 1, kind: input, shape index: {}]
  %s2 = inlined_call_operand.vmem [shape: s32[12,1], index: 2, kind: input, shape index: {}]
  %s3 = inlined_call_operand.vmem [shape: s32[1,12], index: 3, kind: input, shape index: {}]
  %s4 = inlined_call_operand.vmem [shape: s32[8,1], index: 4, kind: input, shape index: {}]
  %s5 = inlined_call_operand.vmem [shape: bf16[12,32], index: 5, kind: input, shape index: {}]
  %s6 = inlined_call_operand.vmem [shape: bf16[8,32], index: 6, kind: input, shape index: {}]
  %s7 = inlined_call_operand.vmem [shape: bf16[2,32], index: 7, kind: input, shape index: {}]
  %s8 = inlined_call_operand.vmem [shape: bf16[4,32,32], index: 8, kind: input, shape index: {}]
  %s9 = inlined_call_operand.vmem [shape: bf16[4,32,32], index: 9, kind: input, shape index: {}]
  %s10 = inlined_call_operand.vmem [shape: bf16[32,16], index: 10, kind: input, shape index: {}]
  %s11 = inlined_call_operand.hbm [shape: f32[5,32], index: 11, kind: input, shape index: {}]
  %s12 = inlined_call_operand.hbm [shape: f32[1,16], index: 12, kind: input, shape index: {}]
  %s13 = inlined_call_operand.hbm [shape: f32[8,16], index: 13, kind: output, shape index: {}]
  %s14 = sld [smem:[#allocation0]]
  $region70: #{subgraph_model_ml2_forward.1} parent=0
    _
  %s16 = ssub.s32 1, %s14
  %s17 = scalar_select 0, %s16, %s14
  $region1: #{subgraph_model_ml2_forward.1} parent=0
    #allocation2 [shape = 'u8[4096]{0}', space=vmem, size = 0x1000, scoped, tag = 'input window, operand 11, single buffered']
    #allocation3 [shape = 's32[1]{0}', space=sflag, size = 0x4, scoped, tag = 'scoped memory for subgraph_model_ml2_forward.1']
    #allocation4 [shape = 's32[1]{0}', space=sflag, size = 0x4, scoped, tag = 'scoped memory for subgraph_model_ml2_forward.1']
    #allocation5 [shape = 'u8[512]{0}', space=vmem, size = 0x400, scoped, tag = 'input window, operand 12, single buffered']
    #allocation6 [shape = 's32[1]{0}', space=sflag, size = 0x4, scoped, tag = 'scoped memory for subgraph_model_ml2_forward.1']
    #allocation7 [shape = 'u8[4096]{0}', space=vmem, size = 0x1000, scoped, tag = 'output window, operand 0, single buffered']
    %18 = vsyncpa [#allocation3], 0
    %19 = vsyncpa [#allocation6], 0
    %20 = vsyncpa [#allocation4], 0
    // Predicated region
    $region2: #{subgraph_model_ml2_forward.1} parent=1 // pred_check
      _
    $region3: #{subgraph_model_ml2_forward.1} parent=1 // pred_check_branch
      %22 = sbr.rel (0) target = $region5
    $region4: #{subgraph_model_ml2_forward.1} parent=1 // pred_region
      _
    $region5: #{subgraph_model_ml2_forward.1} parent=1 // pred_fallthru
      _
    // Predicated region
    $region6: #{subgraph_model_ml2_forward.1} parent=1 // pred_check
      _
    $region7: #{subgraph_model_ml2_forward.1} parent=1 // pred_check_branch
      %24 = sbr.rel (0) target = $region9
    $region8: #{subgraph_model_ml2_forward.1} parent=1 // pred_region
      _
    $region9: #{subgraph_model_ml2_forward.1} parent=1 // pred_fallthru
      _
    // Predicated region
    $region10: #{subgraph_model_ml2_forward.1} parent=1 // pred_check
      _
    $region11: #{subgraph_model_ml2_forward.1} parent=1 // pred_check_branch
      %26 = sbr.rel (0) target = $region13
    $region12: #{subgraph_model_ml2_forward.1} parent=1 // pred_region
      _
    $region13: #{subgraph_model_ml2_forward.1} parent=1 // pred_fallthru
      _
    // Predicated region
    $region14: #{subgraph_model_ml2_forward.1} parent=1 // pred_check
      _
    $region15: #{subgraph_model_ml2_forward.1} parent=1 // pred_check_branch
      %28 = sbr.rel (0) target = $region17
    $region16: #{subgraph_model_ml2_forward.1} parent=1 // pred_region
      _
    $region17: #{subgraph_model_ml2_forward.1} parent=1 // pred_fallthru
      _
    // Predicated region
    $region18: #{subgraph_model_ml2_forward.1} parent=1 // pred_check
      _
    $region19: #{subgraph_model_ml2_forward.1} parent=1 // pred_check_branch
      %30 = sbr.rel (0) target = $region21
    $region20: #{subgraph_model_ml2_forward.1} parent=1 // pred_region
      _
    $region21: #{subgraph_model_ml2_forward.1} parent=1 // pred_fallthru
      _
    // Predicated region
    $region22: #{subgraph_model_ml2_forward.1} parent=1 // pred_check
      _
    $region23: #{subgraph_model_ml2_forward.1} parent=1 // pred_check_branch
      %32 = sbr.rel (0) target = $region25
    $region24: #{subgraph_model_ml2_forward.1} parent=1 // pred_region
      _
    $region25: #{subgraph_model_ml2_forward.1} parent=1 // pred_fallthru
      _
    // Predicated region
    $region26: #{subgraph_model_ml2_forward.1} parent=1 // pred_check
      _
    $region27: #{subgraph_model_ml2_forward.1} parent=1 // pred_check_branch
      %34 = sbr.rel (0) target = $region29
    $region28: #{subgraph_model_ml2_forward.1} parent=1 // pred_region
      _
    $region29: #{subgraph_model_ml2_forward.1} parent=1 // pred_fallthru
      _
    // Predicated region
    $region30: #{subgraph_model_ml2_forward.1} parent=1 // pred_check
      _
    $region31: #{subgraph_model_ml2_forward.1} parent=1 // pred_check_branch
      %36 = sbr.rel (0) target = $region33
    $region32: #{subgraph_model_ml2_forward.1} parent=1 // pred_region
      _
    $region33: #{subgraph_model_ml2_forward.1} parent=1 // pred_fallthru
      _
    // Predicated region
    $region34: #{subgraph_model_ml2_forward.1} parent=1 // pred_check
      _
    $region35: #{subgraph_model_ml2_forward.1} parent=1 // pred_check_branch
      %38 = sbr.rel (0) target = $region37
    $region36: #{subgraph_model_ml2_forward.1} parent=1 // pred_region
      _
    $region37: #{subgraph_model_ml2_forward.1} parent=1 // pred_fallthru
      _
    // Predicated region
    $region38: #{subgraph_model_ml2_forward.1} parent=1 // pred_check
      _
    $region39: #{subgraph_model_ml2_forward.1} parent=1 // pred_check_branch
      %40 = sbr.rel (0) target = $region41
    $region40: #{subgraph_model_ml2_forward.1} parent=1 // pred_region
      _
    $region41: #{subgraph_model_ml2_forward.1} parent=1 // pred_fallthru
      _
    // Predicated region
    $region42: #{subgraph_model_ml2_forward.1} parent=1 // pred_check
      _
    $region43: #{subgraph_model_ml2_forward.1} parent=1 // pred_check_branch
      %42 = sbr.rel (0) target = $region45
    $region44: #{subgraph_model_ml2_forward.1} parent=1 // pred_region
      _
    $region45: #{subgraph_model_ml2_forward.1} parent=1 // pred_fallthru
      _
    // Predicated region
    $region46: #{subgraph_model_ml2_forward.1} parent=1 // pred_check
      _
    $region47: #{subgraph_model_ml2_forward.1} parent=1 // pred_check_branch
      %44 = sbr.rel (0) target = $region49
    $region48: #{subgraph_model_ml2_forward.1} parent=1 // pred_region
      %s46 = ssub.s32 128, 128
      %47 = vsyncadd [#allocation3], %s46
      %s49 = sshll.u32 [#allocation2], 4
      %s50 = int_to_ptr.vmem [resolvable:$true] %s49
      %52 = dma.hbm_to_vmem [thread:$0]  %s11, 128, %s50, [#allocation3]
    $region49: #{subgraph_model_ml2_forward.1} parent=1 // pred_fallthru
      _
    // Predicated region
    $region50: #{subgraph_model_ml2_forward.1} parent=1 // pred_check
      _
    $region51: #{subgraph_model_ml2_forward.1} parent=1 // pred_check_branch
      %54 = sbr.rel (0) target = $region53
    $region52: #{subgraph_model_ml2_forward.1} parent=1 // pred_region
      %s56 = ssub.s32 16, 16
      %57 = vsyncadd [#allocation6], %s56
      %s59 = sshll.u32 [#allocation5], 4
      %s60 = int_to_ptr.vmem [resolvable:$true] %s59
      %62 = dma.hbm_to_vmem [thread:$0]  %s12, 16, %s60, [#allocation6]
    $region53: #{subgraph_model_ml2_forward.1} parent=1 // pred_fallthru
      _
    // Predicated region
    $region54: #{subgraph_model_ml2_forward.1} parent=1 // pred_check
      _
    $region55: #{subgraph_model_ml2_forward.1} parent=1 // pred_check_branch
      %64 = sbr.rel (0) target = $region57
    $region56: #{subgraph_model_ml2_forward.1} parent=1 // pred_region
      %65 = dma.done [#allocation3], 128
    $region57: #{subgraph_model_ml2_forward.1} parent=1 // pred_fallthru
      _
    // Predicated region
    $region58: #{subgraph_model_ml2_forward.1} parent=1 // pred_check
      _
    $region59: #{subgraph_model_ml2_forward.1} parent=1 // pred_check_branch
      %67 = sbr.rel (0) target = $region61
    $region60: #{subgraph_model_ml2_forward.1} parent=1 // pred_region
      %68 = dma.done [#allocation6], 16
    $region61: #{subgraph_model_ml2_forward.1} parent=1 // pred_fallthru
      _
    %v70 = vld [vmem:[%s5] sm:$0xf]
    %v71 = vld [vmem:[%s5 + $0x4] sm:$0x3]
    %v72 = vld [vmem:[%s6] sm:$0xf]
    %v73 = vld [vmem:[%s7] sm:$0x1]
    %v74 = vld [vmem:[%s0] sm:$0xff]
    %v75 = vld [vmem:[%s0 + $0x8] sm:$0x3f]
    %v76 = vlaneseq
    %v77 = vand.u32 %v76, 127
    %78 = vset.pattern.permute.xlu0 0
    %79 = vperm.xlu0 %78, %v74
    %v80 = vpop.permute.xlu0 %79
    %81 = vset.pattern.permute.xlu0 0
    %82 = vperm.xlu0 %81, %v75
    %v83 = vpop.permute.xlu0 %82
    %vm84 = vcmp.eq.s32.totalorder %v80, %v77
    %vm85 = vcmp.eq.s32.totalorder %v83, %v77
    %v86 = vsel %vm84, 1.0, 0.0
    %v87 = vsel %vm85, 1.0, 0.0
    %v88 = vpack.c.bf16 %v87, %v86
    %v89 = vld [vmem:[%s1] sm:$0x1]
    %v90 = vlaneseq
    %v91 = vshrl.u32 %v90, 7
    %v92 = vlaneseq
    %v93 = vshrl.u32 %v92, 7
    %v94 = vsub.s32 0, %v93
    %v95 = vrot.slane %v89, %v94
    %vm96 = vcmp.eq.s32.totalorder %v95, %v91
    %v97 = vsel %vm96, 1.0, 0.0
    %v98 = vpack.c.bf16 %v97, %v97
    %vm99 = vcmask 64512
    %v101 = vsel %vm99, %v88, 0
    %vm103 = vcmask 1043456
    %v105 = vsel %vm103, %v72, 0
    %107 = vmatprep.subr.bf16.mxu0 0
    %108 = vmatpush1.bf16.msra.mxu0 %v105
    %109 = vmatprep.subr.bf16.mxu0 0
    %110 = vmatpush1.bf16.msra.mxu0 0
    %111 = vmatprep.subr.bf16.mxu0 0
    %112 = vmatpush1.bf16.msra.mxu0 0
    %113 = vmatprep.subr.bf16.mxu0 0
    %114 = vmatpush1.bf16.msra.mxu0 0
    %115 = vmatprep.subr.bf16.mxu0 0
    %116 = vmatpush1.bf16.msra.mxu0 0
    %117 = vmatprep.subr.bf16.mxu0 0
    %118 = vmatpush1.bf16.msra.mxu0 0
    %119 = vmatprep.subr.bf16.mxu0 0
    %120 = vmatpush1.bf16.msra.mxu0 0
    %121 = vmatprep.subr.bf16.mxu0 0
    %122 = vmatpush1.bf16.msra.mxu0 0
    %123 = vmatprep.subr.bf16.mxu0 0
    %124 = vmatpush1.bf16.msra.mxu0 0
    %125 = vmatprep.subr.bf16.mxu0 0
    %126 = vmatpush1.bf16.msra.mxu0 0
    %127 = vmatprep.subr.bf16.mxu0 0
    %128 = vmatpush1.bf16.msra.mxu0 0
    %129 = vmatprep.subr.bf16.mxu0 0
    %130 = vmatpush1.bf16.msra.mxu0 0
    %131 = vmatprep.subr.bf16.mxu0 0
    %132 = vmatpush1.bf16.msra.mxu0 0
    %133 = vmatprep.subr.bf16.mxu0 0
    %134 = vmatpush1.bf16.msra.mxu0 0
    %135 = vmatprep.subr.bf16.mxu0 0
    %136 = vmatpush1.bf16.msra.mxu0 0
    %137 = vmatprep.subr.bf16.mxu0 0
    %138 = vmatpush1.bf16.msra.mxu0 0
    %139 = vmatprep.mubr.bf16.mxu0 0
    %140 = vmatmul.mubr.bf16.gmra.mrb[0].mxu0 %v101
    %v141 = vpop.f32.mrb[0].mxu0
    %v142 = vadd.f32 0.0, %v141
    %v143 = vpop.f32.mrb[0].mxu0
    %v144 = vpop.f32.mrb[0].mxu0
    %v145 = vadd.f32 0.0, %v144
    %v146 = vpop.f32.mrb[0].mxu0
    %147 = vdwg.mxu0
    %v148 = vpack.c.bf16 %v145, %v142
    %vm149 = vcmask 113664
    %v151 = vsel %vm149, %v98, 0
    %vm153 = vcmask 1046528
    %v155 = vsel %vm153, %v148, 0
    %157 = vmatprep.subr.bf16.mxu0 0
    %158 = vmatpush1.bf16.msra.mxu0 %v155
    %159 = vmatprep.subr.bf16.mxu0 0
    %160 = vmatpush1.bf16.msra.mxu0 0
    %161 = vmatprep.subr.bf16.mxu0 0
    %162 = vmatpush1.bf16.msra.mxu0 0
    %163 = vmatprep.subr.bf16.mxu0 0
    %164 = vmatpush1.bf16.msra.mxu0 0
    %165 = vmatprep.subr.bf16.mxu0 0
    %166 = vmatpush1.bf16.msra.mxu0 0
    %167 = vmatprep.subr.bf16.mxu0 0
    %168 = vmatpush1.bf16.msra.mxu0 0
    %169 = vmatprep.subr.bf16.mxu0 0
    %170 = vmatpush1.bf16.msra.mxu0 0
    %171 = vmatprep.subr.bf16.mxu0 0
    %172 = vmatpush1.bf16.msra.mxu0 0
    %173 = vmatprep.subr.bf16.mxu0 0
    %174 = vmatpush1.bf16.msra.mxu0 0
    %175 = vmatprep.subr.bf16.mxu0 0
    %176 = vmatpush1.bf16.msra.mxu0 0
    %177 = vmatprep.subr.bf16.mxu0 0
    %178 = vmatpush1.bf16.msra.mxu0 0
    %179 = vmatprep.subr.bf16.mxu0 0
    %180 = vmatpush1.bf16.msra.mxu0 0
    %181 = vmatprep.subr.bf16.mxu0 0
    %182 = vmatpush1.bf16.msra.mxu0 0
    %183 = vmatprep.subr.bf16.mxu0 0
    %184 = vmatpush1.bf16.msra.mxu0 0
    %185 = vmatprep.subr.bf16.mxu0 0
    %186 = vmatpush1.bf16.msra.mxu0 0
    %187 = vmatprep.subr.bf16.mxu0 0
    %188 = vmatpush1.bf16.msra.mxu0 0
    %189 = vmatprep.mubr.bf16.mxu0 0
    %190 = vmatmul.mubr.bf16.gmra.mrb[0].mxu0 %v151
    %v191 = vpop.f32.mrb[0].mxu0
    %v192 = vadd.f32 0.0, %v191
    %v193 = vpop.f32.mrb[0].mxu0
    %v194 = vpop.f32.mrb[0].mxu0
    %v195 = vpop.f32.mrb[0].mxu0
    %196 = vdwg.mxu0
    %v197 = vld [vmem:[%s8] sm:$0xf]
    %v198 = vld [vmem:[%s8 + $0x4] sm:$0xf]
    %v199 = vld [vmem:[%s8 + $0x8] sm:$0xf]
    %v200 = vld [vmem:[%s8 + $0xc] sm:$0xf]
    %v201 = vld [vmem:[#allocation2] sm:$0x1]
    %s202 = scalar_lea.vmem %s8, 16
    %v203 = vld [vmem:[%s202] sm:$0xf]
    %v204 = vld [vmem:[%s202 + $0x4] sm:$0xf]
    %v205 = vld [vmem:[%s202 + $0x8] sm:$0xf]
    %v206 = vld [vmem:[%s202 + $0xc] sm:$0xf]
    %v207 = vld [vmem:[#allocation2 + $0x1] sm:$0x1]
    %v208 = vpack.c.bf16 %v192, %v192
    %v209 = vlaneseq
    %v210 = vshrl.u32 %v209, 7
    %v211 = vsub.s32 0, %v210
    %v212 = vrot.slane %v201, %v211
    %v217 = vunpack.c.l.b16 %v197
    %v218 = vunpack.c.l.b16 %v198
    %v219 = vunpack.c.l.b16 %v199
    %v220 = vunpack.c.l.b16 %v200
    %v221 = vpack.c.b16 %v218, %v217
    %v222 = vpack.c.b16 %v220, %v219
    %vm225 = vcmask 261120
    %v227 = vsel %vm225, %v208, 0
    %229 = vmatprep.subr.bf16.mxu0 0
    %230 = vmatpush1.bf16.msra.mxu0 %v221
    %231 = vmatprep.subr.bf16.mxu0 0
    %232 = vmatpush1.bf16.msra.mxu0 %v222
    %233 = vmatprep.subr.bf16.mxu0 0
    %234 = vmatpush1.bf16.msra.mxu0 0
    %235 = vmatprep.subr.bf16.mxu0 0
    %236 = vmatpush1.bf16.msra.mxu0 0
    %237 = vmatprep.subr.bf16.mxu0 0
    %238 = vmatpush1.bf16.msra.mxu0 0
    %239 = vmatprep.subr.bf16.mxu0 0
    %240 = vmatpush1.bf16.msra.mxu0 0
    %241 = vmatprep.subr.bf16.mxu0 0
    %242 = vmatpush1.bf16.msra.mxu0 0
    %243 = vmatprep.subr.bf16.mxu0 0
    %244 = vmatpush1.bf16.msra.mxu0 0
    %245 = vmatprep.subr.bf16.mxu0 0
    %246 = vmatpush1.bf16.msra.mxu0 0
    %247 = vmatprep.subr.bf16.mxu0 0
    %248 = vmatpush1.bf16.msra.mxu0 0
    %249 = vmatprep.subr.bf16.mxu0 0
    %250 = vmatpush1.bf16.msra.mxu0 0
    %251 = vmatprep.subr.bf16.mxu0 0
    %252 = vmatpush1.bf16.msra.mxu0 0
    %253 = vmatprep.subr.bf16.mxu0 0
    %254 = vmatpush1.bf16.msra.mxu0 0
    %255 = vmatprep.subr.bf16.mxu0 0
    %256 = vmatpush1.bf16.msra.mxu0 0
    %257 = vmatprep.subr.bf16.mxu0 0
    %258 = vmatpush1.bf16.msra.mxu0 0
    %259 = vmatprep.subr.bf16.mxu0 0
    %260 = vmatpush1.bf16.msra.mxu0 0
    %261 = vmatprep.mubr.bf16.mxu0 0
    %262 = vmatmul.mubr.bf16.gmra.mrb[0].mxu0 %v227
    %v263 = vpop.f32.mrb[0].mxu0
    %v264 = vadd.f32 %v212, %v263
    %v265 = vpop.f32.mrb[0].mxu0
    %v266 = vpop.f32.mrb[0].mxu0
    %v267 = vpop.f32.mrb[0].mxu0
    %268 = vdwg.mxu0
    %v269 = vmax.f32 %v264, 0.0
    %v270 = vpack.c.bf16 %v269, %v269
    %v271 = vlaneseq
    %v272 = vshrl.u32 %v271, 7
    %v273 = vsub.s32 0, %v272
    %v274 = vrot.slane %v207, %v273
    %v279 = vunpack.c.l.b16 %v203
    %v280 = vunpack.c.l.b16 %v204
    %v281 = vunpack.c.l.b16 %v205
    %v282 = vunpack.c.l.b16 %v206
    %v283 = vpack.c.b16 %v280, %v279
    %v284 = vpack.c.b16 %v282, %v281
    %v288 = vsel %vm225, %v270, 0
    %290 = vmatprep.subr.bf16.mxu0 0
    %291 = vmatpush1.bf16.msra.mxu0 %v283
    %292 = vmatprep.subr.bf16.mxu0 0
    %293 = vmatpush1.bf16.msra.mxu0 %v284
    %294 = vmatprep.subr.bf16.mxu0 0
    %295 = vmatpush1.bf16.msra.mxu0 0
    %296 = vmatprep.subr.bf16.mxu0 0
    %297 = vmatpush1.bf16.msra.mxu0 0
    %298 = vmatprep.subr.bf16.mxu0 0
    %299 = vmatpush1.bf16.msra.mxu0 0
    %300 = vmatprep.subr.bf16.mxu0 0
    %301 = vmatpush1.bf16.msra.mxu0 0
    %302 = vmatprep.subr.bf16.mxu0 0
    %303 = vmatpush1.bf16.msra.mxu0 0
    %304 = vmatprep.subr.bf16.mxu0 0
    %305 = vmatpush1.bf16.msra.mxu0 0
    %306 = vmatprep.subr.bf16.mxu0 0
    %307 = vmatpush1.bf16.msra.mxu0 0
    %308 = vmatprep.subr.bf16.mxu0 0
    %309 = vmatpush1.bf16.msra.mxu0 0
    %310 = vmatprep.subr.bf16.mxu0 0
    %311 = vmatpush1.bf16.msra.mxu0 0
    %312 = vmatprep.subr.bf16.mxu0 0
    %313 = vmatpush1.bf16.msra.mxu0 0
    %314 = vmatprep.subr.bf16.mxu0 0
    %315 = vmatpush1.bf16.msra.mxu0 0
    %316 = vmatprep.subr.bf16.mxu0 0
    %317 = vmatpush1.bf16.msra.mxu0 0
    %318 = vmatprep.subr.bf16.mxu0 0
    %319 = vmatpush1.bf16.msra.mxu0 0
    %320 = vmatprep.subr.bf16.mxu0 0
    %321 = vmatpush1.bf16.msra.mxu0 0
    %322 = vmatprep.mubr.bf16.mxu0 0
    %323 = vmatmul.mubr.bf16.gmra.mrb[0].mxu0 %v288
    %v324 = vpop.f32.mrb[0].mxu0
    %v325 = vadd.f32 %v274, %v324
    %v326 = vpop.f32.mrb[0].mxu0
    %v327 = vpop.f32.mrb[0].mxu0
    %v328 = vpop.f32.mrb[0].mxu0
    %329 = vdwg.mxu0
    %v330 = vld [vmem:[%s2] sm:$0xff]
    %v331 = vld [vmem:[%s2 + $0x8] sm:$0xf]
    %332 = vset.pattern.permute.xlu0 0
    %333 = vperm.xlu0 %332, %v330
    %v334 = vpop.permute.xlu0 %333
    %335 = vset.pattern.permute.xlu0 0
    %336 = vperm.xlu0 %335, %v331
    %v337 = vpop.permute.xlu0 %336
    %vm338 = vcmp.eq.s32.totalorder %v334, %v77
    %vm339 = vcmp.eq.s32.totalorder %v337, %v77
    %v340 = vsel %vm338, 1.0, 0.0
    %v341 = vsel %vm339, 1.0, 0.0
    %v342 = vpack.c.bf16 %v341, %v340
    %v343 = vld [vmem:[%s3] sm:$0x1]
    %v344 = vlaneseq
    %v345 = vshrl.u32 %v344, 7
    %v346 = vsub.s32 0, %v345
    %v347 = vrot.slane %v343, %v346
    %vm348 = vcmp.eq.s32.totalorder %v347, %v91
    %v349 = vsel %vm348, 1.0, 0.0
    %v350 = vpack.c.bf16 %v349, %v349
    %v353 = vunpack.c.l.b16 %v70
    %v354 = vunpack.c.l.b16 %v71
    %v355 = vpack.c.b16 %v354, %v353
    %vm356 = vcmask 97280
    %v358 = vsel %vm356, %v342, 0
    %vm360 = vcmask 1045504
    %v362 = vsel %vm360, %v355, 0
    %364 = vmatprep.subr.bf16.mxu0 0
    %365 = vmatpush1.bf16.msra.mxu0 %v362
    %366 = vmatprep.subr.bf16.mxu0 0
    %367 = vmatpush1.bf16.msra.mxu0 0
    %368 = vmatprep.subr.bf16.mxu0 0
    %369 = vmatpush1.bf16.msra.mxu0 0
    %370 = vmatprep.subr.bf16.mxu0 0
    %371 = vmatpush1.bf16.msra.mxu0 0
    %372 = vmatprep.subr.bf16.mxu0 0
    %373 = vmatpush1.bf16.msra.mxu0 0
    %374 = vmatprep.subr.bf16.mxu0 0
    %375 = vmatpush1.bf16.msra.mxu0 0
    %376 = vmatprep.subr.bf16.mxu0 0
    %377 = vmatpush1.bf16.msra.mxu0 0
    %378 = vmatprep.subr.bf16.mxu0 0
    %379 = vmatpush1.bf16.msra.mxu0 0
    %380 = vmatprep.subr.bf16.mxu0 0
    %381 = vmatpush1.bf16.msra.mxu0 0
    %382 = vmatprep.subr.bf16.mxu0 0
    %383 = vmatpush1.bf16.msra.mxu0 0
    %384 = vmatprep.subr.bf16.mxu0 0
    %385 = vmatpush1.bf16.msra.mxu0 0
    %386 = vmatprep.subr.bf16.mxu0 0
    %387 = vmatpush1.bf16.msra.mxu0 0
    %388 = vmatprep.subr.bf16.mxu0 0
    %389 = vmatpush1.bf16.msra.mxu0 0
    %390 = vmatprep.subr.bf16.mxu0 0
    %391 = vmatpush1.bf16.msra.mxu0 0
    %392 = vmatprep.subr.bf16.mxu0 0
    %393 = vmatpush1.bf16.msra.mxu0 0
    %394 = vmatprep.subr.bf16.mxu0 0
    %395 = vmatpush1.bf16.msra.mxu0 0
    %396 = vmatprep.mubr.bf16.mxu0 0
    %397 = vmatmul.mubr.bf16.gmra.mrb[0].mxu0 %v358
    %v398 = vpop.f32.mrb[0].mxu0
    %v399 = vadd.f32 0.0, %v398
    %v400 = vpop.f32.mrb[0].mxu0
    %v401 = vpop.f32.mrb[0].mxu0
    %v402 = vadd.f32 0.0, %v401
    %v403 = vpop.f32.mrb[0].mxu0
    %404 = vdwg.mxu0
    %v405 = vpack.c.bf16 %v402, %v399
    %v407 = vsel %vm356, %v350, 0
    %v410 = vsel %vm360, %v405, 0
    %412 = vmatprep.subr.bf16.mxu0 0
    %413 = vmatpush1.bf16.msra.mxu0 %v410
    %414 = vmatprep.subr.bf16.mxu0 0
    %415 = vmatpush1.bf16.msra.mxu0 0
    %416 = vmatprep.subr.bf16.mxu0 0
    %417 = vmatpush1.bf16.msra.mxu0 0
    %418 = vmatprep.subr.bf16.mxu0 0
    %419 = vmatpush1.bf16.msra.mxu0 0
    %420 = vmatprep.subr.bf16.mxu0 0
    %421 = vmatpush1.bf16.msra.mxu0 0
    %422 = vmatprep.subr.bf16.mxu0 0
    %423 = vmatpush1.bf16.msra.mxu0 0
    %424 = vmatprep.subr.bf16.mxu0 0
    %425 = vmatpush1.bf16.msra.mxu0 0
    %426 = vmatprep.subr.bf16.mxu0 0
    %427 = vmatpush1.bf16.msra.mxu0 0
    %428 = vmatprep.subr.bf16.mxu0 0
    %429 = vmatpush1.bf16.msra.mxu0 0
    %430 = vmatprep.subr.bf16.mxu0 0
    %431 = vmatpush1.bf16.msra.mxu0 0
    %432 = vmatprep.subr.bf16.mxu0 0
    %433 = vmatpush1.bf16.msra.mxu0 0
    %434 = vmatprep.subr.bf16.mxu0 0
    %435 = vmatpush1.bf16.msra.mxu0 0
    %436 = vmatprep.subr.bf16.mxu0 0
    %437 = vmatpush1.bf16.msra.mxu0 0
    %438 = vmatprep.subr.bf16.mxu0 0
    %439 = vmatpush1.bf16.msra.mxu0 0
    %440 = vmatprep.subr.bf16.mxu0 0
    %441 = vmatpush1.bf16.msra.mxu0 0
    %442 = vmatprep.subr.bf16.mxu0 0
    %443 = vmatpush1.bf16.msra.mxu0 0
    %444 = vmatprep.mubr.bf16.mxu0 0
    %445 = vmatmul.mubr.bf16.gmra.mrb[0].mxu0 %v407
    %v446 = vpop.f32.mrb[0].mxu0
    %v447 = vadd.f32 0.0, %v446
    %v448 = vpop.f32.mrb[0].mxu0
    %v449 = vpop.f32.mrb[0].mxu0
    %v450 = vpop.f32.mrb[0].mxu0
    %451 = vdwg.mxu0
    %s452 = scalar_lea.vmem %s8, 32
    %v453 = vld [vmem:[%s452] sm:$0xf]
    %v454 = vld [vmem:[%s452 + $0x4] sm:$0xf]
    %v455 = vld [vmem:[%s452 + $0x8] sm:$0xf]
    %v456 = vld [vmem:[%s452 + $0xc] sm:$0xf]
    %v457 = vld [vmem:[#allocation2 + $0x2] sm:$0x1]
    %s458 = scalar_lea.vmem %s8, 48
    %v459 = vld [vmem:[%s458] sm:$0xf]
    %v460 = vld [vmem:[%s458 + $0x4] sm:$0xf]
    %v461 = vld [vmem:[%s458 + $0x8] sm:$0xf]
    %v462 = vld [vmem:[%s458 + $0xc] sm:$0xf]
    %v463 = vld [vmem:[#allocation2 + $0x3] sm:$0x1]
    %v464 = vpack.c.bf16 %v447, %v447
    %v465 = vlaneseq
    %v466 = vshrl.u32 %v465, 7
    %v467 = vsub.s32 0, %v466
    %v468 = vrot.slane %v457, %v467
    %v473 = vunpack.c.l.b16 %v453
    %v474 = vunpack.c.l.b16 %v454
    %v475 = vunpack.c.l.b16 %v455
    %v476 = vunpack.c.l.b16 %v456
    %v477 = vpack.c.b16 %v474, %v473
    %v478 = vpack.c.b16 %v476, %v475
    %v482 = vsel %vm225, %v464, 0
    %484 = vmatprep.subr.bf16.mxu0 0
    %485 = vmatpush1.bf16.msra.mxu0 %v477
    %486 = vmatprep.subr.bf16.mxu0 0
    %487 = vmatpush1.bf16.msra.mxu0 %v478
    %488 = vmatprep.subr.bf16.mxu0 0
    %489 = vmatpush1.bf16.msra.mxu0 0
    %490 = vmatprep.subr.bf16.mxu0 0
    %491 = vmatpush1.bf16.msra.mxu0 0
    %492 = vmatprep.subr.bf16.mxu0 0
    %493 = vmatpush1.bf16.msra.mxu0 0
    %494 = vmatprep.subr.bf16.mxu0 0
    %495 = vmatpush1.bf16.msra.mxu0 0
    %496 = vmatprep.subr.bf16.mxu0 0
    %497 = vmatpush1.bf16.msra.mxu0 0
    %498 = vmatprep.subr.bf16.mxu0 0
    %499 = vmatpush1.bf16.msra.mxu0 0
    %500 = vmatprep.subr.bf16.mxu0 0
    %501 = vmatpush1.bf16.msra.mxu0 0
    %502 = vmatprep.subr.bf16.mxu0 0
    %503 = vmatpush1.bf16.msra.mxu0 0
    %504 = vmatprep.subr.bf16.mxu0 0
    %505 = vmatpush1.bf16.msra.mxu0 0
    %506 = vmatprep.subr.bf16.mxu0 0
    %507 = vmatpush1.bf16.msra.mxu0 0
    %508 = vmatprep.subr.bf16.mxu0 0
    %509 = vmatpush1.bf16.msra.mxu0 0
    %510 = vmatprep.subr.bf16.mxu0 0
    %511 = vmatpush1.bf16.msra.mxu0 0
    %512 = vmatprep.subr.bf16.mxu0 0
    %513 = vmatpush1.bf16.msra.mxu0 0
    %514 = vmatprep.subr.bf16.mxu0 0
    %515 = vmatpush1.bf16.msra.mxu0 0
    %516 = vmatprep.mubr.bf16.mxu0 0
    %517 = vmatmul.mubr.bf16.gmra.mrb[0].mxu0 %v482
    %v518 = vpop.f32.mrb[0].mxu0
    %v519 = vadd.f32 %v468, %v518
    %v520 = vpop.f32.mrb[0].mxu0
    %v521 = vpop.f32.mrb[0].mxu0
    %v522 = vpop.f32.mrb[0].mxu0
    %523 = vdwg.mxu0
    %v524 = vmax.f32 %v519, 0.0
    %v525 = vpack.c.bf16 %v524, %v524
    %v526 = vlaneseq
    %v527 = vshrl.u32 %v526, 7
    %v528 = vsub.s32 0, %v527
    %v529 = vrot.slane %v463, %v528
    %v534 = vunpack.c.l.b16 %v459
    %v535 = vunpack.c.l.b16 %v460
    %v536 = vunpack.c.l.b16 %v461
    %v537 = vunpack.c.l.b16 %v462
    %v538 = vpack.c.b16 %v535, %v534
    %v539 = vpack.c.b16 %v537, %v536
    %v543 = vsel %vm225, %v525, 0
    %545 = vmatprep.subr.bf16.mxu0 0
    %546 = vmatpush1.bf16.msra.mxu0 %v538
    %547 = vmatprep.subr.bf16.mxu0 0
    %548 = vmatpush1.bf16.msra.mxu0 %v539
    %549 = vmatprep.subr.bf16.mxu0 0
    %550 = vmatpush1.bf16.msra.mxu0 0
    %551 = vmatprep.subr.bf16.mxu0 0
    %552 = vmatpush1.bf16.msra.mxu0 0
    %553 = vmatprep.subr.bf16.mxu0 0
    %554 = vmatpush1.bf16.msra.mxu0 0
    %555 = vmatprep.subr.bf16.mxu0 0
    %556 = vmatpush1.bf16.msra.mxu0 0
    %557 = vmatprep.subr.bf16.mxu0 0
    %558 = vmatpush1.bf16.msra.mxu0 0
    %559 = vmatprep.subr.bf16.mxu0 0
    %560 = vmatpush1.bf16.msra.mxu0 0
    %561 = vmatprep.subr.bf16.mxu0 0
    %562 = vmatpush1.bf16.msra.mxu0 0
    %563 = vmatprep.subr.bf16.mxu0 0
    %564 = vmatpush1.bf16.msra.mxu0 0
    %565 = vmatprep.subr.bf16.mxu0 0
    %566 = vmatpush1.bf16.msra.mxu0 0
    %567 = vmatprep.subr.bf16.mxu0 0
    %568 = vmatpush1.bf16.msra.mxu0 0
    %569 = vmatprep.subr.bf16.mxu0 0
    %570 = vmatpush1.bf16.msra.mxu0 0
    %571 = vmatprep.subr.bf16.mxu0 0
    %572 = vmatpush1.bf16.msra.mxu0 0
    %573 = vmatprep.subr.bf16.mxu0 0
    %574 = vmatpush1.bf16.msra.mxu0 0
    %575 = vmatprep.subr.bf16.mxu0 0
    %576 = vmatpush1.bf16.msra.mxu0 0
    %577 = vmatprep.mubr.bf16.mxu0 0
    %578 = vmatmul.mubr.bf16.gmra.mrb[0].mxu0 %v543
    %v579 = vpop.f32.mrb[0].mxu0
    %v580 = vadd.f32 %v529, %v579
    %v581 = vpop.f32.mrb[0].mxu0
    %v582 = vpop.f32.mrb[0].mxu0
    %v583 = vpop.f32.mrb[0].mxu0
    %584 = vdwg.mxu0
    %v585 = vld [vmem:[%s4] sm:$0xff]
    %586 = vset.pattern.permute.xlu0 0
    %587 = vperm.xlu0 %586, %v585
    %v588 = vpop.permute.xlu0 %587
    %vm589 = vcmp.eq.s32.totalorder %v588, %v77
    %v590 = vsel %vm589, 1.0, 0.0
    %v591 = vpack.c.bf16 %v590, %v590
    %vm592 = vcmask 15360
    %v594 = vsel %vm592, %v591, 0
    %vm596 = vcmask 1040384
    %v598 = vsel %vm596, %v73, 0
    %600 = vmatprep.subr.bf16.mxu0 0
    %601 = vmatpush1.bf16.msra.mxu0 %v598
    %602 = vmatprep.subr.bf16.mxu0 0
    %603 = vmatpush1.bf16.msra.mxu0 0
    %604 = vmatprep.subr.bf16.mxu0 0
    %605 = vmatpush1.bf16.msra.mxu0 0
    %606 = vmatprep.subr.bf16.mxu0 0
    %607 = vmatpush1.bf16.msra.mxu0 0
    %608 = vmatprep.subr.bf16.mxu0 0
    %609 = vmatpush1.bf16.msra.mxu0 0
    %610 = vmatprep.subr.bf16.mxu0 0
    %611 = vmatpush1.bf16.msra.mxu0 0
    %612 = vmatprep.subr.bf16.mxu0 0
    %613 = vmatpush1.bf16.msra.mxu0 0
    %614 = vmatprep.subr.bf16.mxu0 0
    %615 = vmatpush1.bf16.msra.mxu0 0
    %616 = vmatprep.subr.bf16.mxu0 0
    %617 = vmatpush1.bf16.msra.mxu0 0
    %618 = vmatprep.subr.bf16.mxu0 0
    %619 = vmatpush1.bf16.msra.mxu0 0
    %620 = vmatprep.subr.bf16.mxu0 0
    %621 = vmatpush1.bf16.msra.mxu0 0
    %622 = vmatprep.subr.bf16.mxu0 0
    %623 = vmatpush1.bf16.msra.mxu0 0
    %624 = vmatprep.subr.bf16.mxu0 0
    %625 = vmatpush1.bf16.msra.mxu0 0
    %626 = vmatprep.subr.bf16.mxu0 0
    %627 = vmatpush1.bf16.msra.mxu0 0
    %628 = vmatprep.subr.bf16.mxu0 0
    %629 = vmatpush1.bf16.msra.mxu0 0
    %630 = vmatprep.subr.bf16.mxu0 0
    %631 = vmatpush1.bf16.msra.mxu0 0
    %632 = vmatprep.mubr.bf16.mxu0 0
    %633 = vmatmul.mubr.bf16.gmra.mrb[0].mxu0 %v594
    %v634 = vpop.f32.mrb[0].mxu0
    %v635 = vadd.f32 0.0, %v634
    %v636 = vpop.f32.mrb[0].mxu0
    %v637 = vpop.f32.mrb[0].mxu0
    %v638 = vpop.f32.mrb[0].mxu0
    %639 = vdwg.mxu0
    %v640 = vpack.c.bf16 %v580, %v580
    %v641 = vld [vmem:[%s9] sm:$0xf]
    %v642 = vld [vmem:[%s9 + $0x4] sm:$0xf]
    %v643 = vld [vmem:[%s9 + $0x8] sm:$0xf]
    %v644 = vld [vmem:[%s9 + $0xc] sm:$0xf]
    %s645 = scalar_lea.vmem %s9, 16
    %v646 = vld [vmem:[%s645] sm:$0xf]
    %v647 = vld [vmem:[%s645 + $0x4] sm:$0xf]
    %v648 = vld [vmem:[%s645 + $0x8] sm:$0xf]
    %v649 = vld [vmem:[%s645 + $0xc] sm:$0xf]
    %v654 = vunpack.c.l.b16 %v646
    %v655 = vunpack.c.l.b16 %v647
    %v656 = vunpack.c.l.b16 %v648
    %v657 = vunpack.c.l.b16 %v649
    %v658 = vpack.c.b16 %v655, %v654
    %v659 = vpack.c.b16 %v657, %v656
    %v662 = vsel %vm225, %v72, 0
    %664 = vmatprep.subr.bf16.mxu0 0
    %665 = vmatpush1.bf16.msra.mxu0 %v658
    %666 = vmatprep.subr.bf16.mxu0 0
    %667 = vmatpush1.bf16.msra.mxu0 %v659
    %668 = vmatprep.subr.bf16.mxu0 0
    %669 = vmatpush1.bf16.msra.mxu0 0
    %670 = vmatprep.subr.bf16.mxu0 0
    %671 = vmatpush1.bf16.msra.mxu0 0
    %672 = vmatprep.subr.bf16.mxu0 0
    %673 = vmatpush1.bf16.msra.mxu0 0
    %674 = vmatprep.subr.bf16.mxu0 0
    %675 = vmatpush1.bf16.msra.mxu0 0
    %676 = vmatprep.subr.bf16.mxu0 0
    %677 = vmatpush1.bf16.msra.mxu0 0
    %678 = vmatprep.subr.bf16.mxu0 0
    %679 = vmatpush1.bf16.msra.mxu0 0
    %680 = vmatprep.subr.bf16.mxu0 0
    %681 = vmatpush1.bf16.msra.mxu0 0
    %682 = vmatprep.subr.bf16.mxu0 0
    %683 = vmatpush1.bf16.msra.mxu0 0
    %684 = vmatprep.subr.bf16.mxu0 0
    %685 = vmatpush1.bf16.msra.mxu0 0
    %686 = vmatprep.subr.bf16.mxu0 0
    %687 = vmatpush1.bf16.msra.mxu0 0
    %688 = vmatprep.subr.bf16.mxu0 0
    %689 = vmatpush1.bf16.msra.mxu0 0
    %690 = vmatprep.subr.bf16.mxu0 0
    %691 = vmatpush1.bf16.msra.mxu0 0
    %692 = vmatprep.subr.bf16.mxu0 0
    %693 = vmatpush1.bf16.msra.mxu0 0
    %694 = vmatprep.subr.bf16.mxu0 0
    %695 = vmatpush1.bf16.msra.mxu0 0
    %696 = vmatprep.mubr.bf16.mxu0 0
    %697 = vmatmul.mubr.bf16.gmra.mrb[0].mxu0 %v662
    %v698 = vpop.f32.mrb[0].mxu0
    %v699 = vadd.f32 0.0, %v698
    %v700 = vpop.f32.mrb[0].mxu0
    %v701 = vpop.f32.mrb[0].mxu0
    %v702 = vpop.f32.mrb[0].mxu0
    %703 = vdwg.mxu0
    %v708 = vunpack.c.l.b16 %v641
    %v709 = vunpack.c.l.b16 %v642
    %v710 = vunpack.c.l.b16 %v643
    %v711 = vunpack.c.l.b16 %v644
    %v712 = vpack.c.b16 %v709, %v708
    %v713 = vpack.c.b16 %v711, %v710
    %v717 = vsel %vm225, %v640, 0
    %719 = vmatprep.subr.bf16.mxu0 0
    %720 = vmatpush1.bf16.msra.mxu0 %v712
    %721 = vmatprep.subr.bf16.mxu0 0
    %722 = vmatpush1.bf16.msra.mxu0 %v713
    %723 = vmatprep.subr.bf16.mxu0 0
    %724 = vmatpush1.bf16.msra.mxu0 0
    %725 = vmatprep.subr.bf16.mxu0 0
    %726 = vmatpush1.bf16.msra.mxu0 0
    %727 = vmatprep.subr.bf16.mxu0 0
    %728 = vmatpush1.bf16.msra.mxu0 0
    %729 = vmatprep.subr.bf16.mxu0 0
    %730 = vmatpush1.bf16.msra.mxu0 0
    %731 = vmatprep.subr.bf16.mxu0 0
    %732 = vmatpush1.bf16.msra.mxu0 0
    %733 = vmatprep.subr.bf16.mxu0 0
    %734 = vmatpush1.bf16.msra.mxu0 0
    %735 = vmatprep.subr.bf16.mxu0 0
    %736 = vmatpush1.bf16.msra.mxu0 0
    %737 = vmatprep.subr.bf16.mxu0 0
    %738 = vmatpush1.bf16.msra.mxu0 0
    %739 = vmatprep.subr.bf16.mxu0 0
    %740 = vmatpush1.bf16.msra.mxu0 0
    %741 = vmatprep.subr.bf16.mxu0 0
    %742 = vmatpush1.bf16.msra.mxu0 0
    %743 = vmatprep.subr.bf16.mxu0 0
    %744 = vmatpush1.bf16.msra.mxu0 0
    %745 = vmatprep.subr.bf16.mxu0 0
    %746 = vmatpush1.bf16.msra.mxu0 0
    %747 = vmatprep.subr.bf16.mxu0 0
    %748 = vmatpush1.bf16.msra.mxu0 0
    %749 = vmatprep.subr.bf16.mxu0 0
    %750 = vmatpush1.bf16.msra.mxu0 0
    %751 = vmatprep.mubr.bf16.mxu0 0
    %752 = vmatmul.mubr.bf16.gmra.mrb[0].mxu0 %v717
    %v753 = vpop.f32.mrb[0].mxu0
    %v754 = vadd.f32 %v699, %v753
    %v755 = vpop.f32.mrb[0].mxu0
    %v756 = vpop.f32.mrb[0].mxu0
    %v757 = vpop.f32.mrb[0].mxu0
    %758 = vdwg.mxu0
    %v759 = vpack.c.bf16 %v325, %v325
    %s760 = scalar_lea.vmem %s9, 32
    %v761 = vld [vmem:[%s760] sm:$0xf]
    %v762 = vld [vmem:[%s760 + $0x4] sm:$0xf]
    %v763 = vld [vmem:[%s760 + $0x8] sm:$0xf]
    %v764 = vld [vmem:[%s760 + $0xc] sm:$0xf]
    %v769 = vunpack.c.l.b16 %v761
    %v770 = vunpack.c.l.b16 %v762
    %v771 = vunpack.c.l.b16 %v763
    %v772 = vunpack.c.l.b16 %v764
    %v773 = vpack.c.b16 %v770, %v769
    %v774 = vpack.c.b16 %v772, %v771
    %v778 = vsel %vm225, %v759, 0
    %780 = vmatprep.subr.bf16.mxu0 0
    %781 = vmatpush1.bf16.msra.mxu0 %v773
    %782 = vmatprep.subr.bf16.mxu0 0
    %783 = vmatpush1.bf16.msra.mxu0 %v774
    %784 = vmatprep.subr.bf16.mxu0 0
    %785 = vmatpush1.bf16.msra.mxu0 0
    %786 = vmatprep.subr.bf16.mxu0 0
    %787 = vmatpush1.bf16.msra.mxu0 0
    %788 = vmatprep.subr.bf16.mxu0 0
    %789 = vmatpush1.bf16.msra.mxu0 0
    %790 = vmatprep.subr.bf16.mxu0 0
    %791 = vmatpush1.bf16.msra.mxu0 0
    %792 = vmatprep.subr.bf16.mxu0 0
    %793 = vmatpush1.bf16.msra.mxu0 0
    %794 = vmatprep.subr.bf16.mxu0 0
    %795 = vmatpush1.bf16.msra.mxu0 0
    %796 = vmatprep.subr.bf16.mxu0 0
    %797 = vmatpush1.bf16.msra.mxu0 0
    %798 = vmatprep.subr.bf16.mxu0 0
    %799 = vmatpush1.bf16.msra.mxu0 0
    %800 = vmatprep.subr.bf16.mxu0 0
    %801 = vmatpush1.bf16.msra.mxu0 0
    %802 = vmatprep.subr.bf16.mxu0 0
    %803 = vmatpush1.bf16.msra.mxu0 0
    %804 = vmatprep.subr.bf16.mxu0 0
    %805 = vmatpush1.bf16.msra.mxu0 0
    %806 = vmatprep.subr.bf16.mxu0 0
    %807 = vmatpush1.bf16.msra.mxu0 0
    %808 = vmatprep.subr.bf16.mxu0 0
    %809 = vmatpush1.bf16.msra.mxu0 0
    %810 = vmatprep.subr.bf16.mxu0 0
    %811 = vmatpush1.bf16.msra.mxu0 0
    %812 = vmatprep.mubr.bf16.mxu0 0
    %813 = vmatmul.mubr.bf16.gmra.mrb[0].mxu0 %v778
    %v814 = vpop.f32.mrb[0].mxu0
    %v815 = vadd.f32 0.0, %v814
    %v816 = vpop.f32.mrb[0].mxu0
    %v817 = vpop.f32.mrb[0].mxu0
    %v818 = vpop.f32.mrb[0].mxu0
    %819 = vdwg.mxu0
    %v820 = vadd.f32 %v754, %v815
    %v821 = vpack.c.bf16 %v635, %v635
    %s822 = scalar_lea.vmem %s9, 48
    %v823 = vld [vmem:[%s822] sm:$0xf]
    %v824 = vld [vmem:[%s822 + $0x4] sm:$0xf]
    %v825 = vld [vmem:[%s822 + $0x8] sm:$0xf]
    %v826 = vld [vmem:[%s822 + $0xc] sm:$0xf]
    %v831 = vunpack.c.l.b16 %v823
    %v832 = vunpack.c.l.b16 %v824
    %v833 = vunpack.c.l.b16 %v825
    %v834 = vunpack.c.l.b16 %v826
    %v835 = vpack.c.b16 %v832, %v831
    %v836 = vpack.c.b16 %v834, %v833
    %v840 = vsel %vm225, %v821, 0
    %842 = vmatprep.subr.bf16.mxu0 0
    %843 = vmatpush1.bf16.msra.mxu0 %v835
    %844 = vmatprep.subr.bf16.mxu0 0
    %845 = vmatpush1.bf16.msra.mxu0 %v836
    %846 = vmatprep.subr.bf16.mxu0 0
    %847 = vmatpush1.bf16.msra.mxu0 0
    %848 = vmatprep.subr.bf16.mxu0 0
    %849 = vmatpush1.bf16.msra.mxu0 0
    %850 = vmatprep.subr.bf16.mxu0 0
    %851 = vmatpush1.bf16.msra.mxu0 0
    %852 = vmatprep.subr.bf16.mxu0 0
    %853 = vmatpush1.bf16.msra.mxu0 0
    %854 = vmatprep.subr.bf16.mxu0 0
    %855 = vmatpush1.bf16.msra.mxu0 0
    %856 = vmatprep.subr.bf16.mxu0 0
    %857 = vmatpush1.bf16.msra.mxu0 0
    %858 = vmatprep.subr.bf16.mxu0 0
    %859 = vmatpush1.bf16.msra.mxu0 0
    %860 = vmatprep.subr.bf16.mxu0 0
    %861 = vmatpush1.bf16.msra.mxu0 0
    %862 = vmatprep.subr.bf16.mxu0 0
    %863 = vmatpush1.bf16.msra.mxu0 0
    %864 = vmatprep.subr.bf16.mxu0 0
    %865 = vmatpush1.bf16.msra.mxu0 0
    %866 = vmatprep.subr.bf16.mxu0 0
    %867 = vmatpush1.bf16.msra.mxu0 0
    %868 = vmatprep.subr.bf16.mxu0 0
    %869 = vmatpush1.bf16.msra.mxu0 0
    %870 = vmatprep.subr.bf16.mxu0 0
    %871 = vmatpush1.bf16.msra.mxu0 0
    %872 = vmatprep.subr.bf16.mxu0 0
    %873 = vmatpush1.bf16.msra.mxu0 0
    %874 = vmatprep.mubr.bf16.mxu0 0
    %875 = vmatmul.mubr.bf16.gmra.mrb[0].mxu0 %v840
    %v876 = vpop.f32.mrb[0].mxu0
    %v877 = vadd.f32 0.0, %v876
    %v878 = vpop.f32.mrb[0].mxu0
    %v879 = vpop.f32.mrb[0].mxu0
    %v880 = vpop.f32.mrb[0].mxu0
    %881 = vdwg.mxu0
    %v882 = vadd.f32 %v820, %v877
    %v883 = vld [vmem:[#allocation2 + $0x4] sm:$0x1]
    %v884 = vlaneseq
    %v885 = vshrl.u32 %v884, 7
    %v886 = vsub.s32 0, %v885
    %v887 = vrot.slane %v883, %v886
    %v888 = vadd.f32 %v882, %v887
    %v889 = vmax.f32 %v888, 0.0
    %v890 = vpack.c.bf16 %v889, %v889
    %v891 = vld [vmem:[%s10] sm:$0xf]
    %v892 = vld [vmem:[%s10 + $0x4] sm:$0xf]
    %v893 = vld [vmem:[%s10 + $0x8] sm:$0xf]
    %v894 = vld [vmem:[%s10 + $0xc] sm:$0xf]
    %v895 = vld [vmem:[#allocation5] sm:$0x1]
    %v897 = vlaneseq
    %v898 = vshrl.u32 %v897, 7
    %v899 = vsub.s32 0, %v898
    %v900 = vrot.slane %v895, %v899
    %v906 = vunpack.c.l.b16 %v891
    %v907 = vunpack.c.l.b16 %v892
    %v908 = vunpack.c.l.b16 %v893
    %v909 = vunpack.c.l.b16 %v894
    %v910 = vpack.c.b16 %v907, %v906
    %v911 = vpack.c.b16 %v909, %v908
    %v915 = vsel %vm225, %v890, 0
    %917 = vmatprep.subr.bf16.mxu0 0
    %918 = vmatpush1.bf16.msra.mxu0 %v910
    %919 = vmatprep.subr.bf16.mxu0 0
    %920 = vmatpush1.bf16.msra.mxu0 %v911
    %921 = vmatprep.subr.bf16.mxu0 0
    %922 = vmatpush1.bf16.msra.mxu0 0
    %923 = vmatprep.subr.bf16.mxu0 0
    %924 = vmatpush1.bf16.msra.mxu0 0
    %925 = vmatprep.subr.bf16.mxu0 0
    %926 = vmatpush1.bf16.msra.mxu0 0
    %927 = vmatprep.subr.bf16.mxu0 0
    %928 = vmatpush1.bf16.msra.mxu0 0
    %929 = vmatprep.subr.bf16.mxu0 0
    %930 = vmatpush1.bf16.msra.mxu0 0
    %931 = vmatprep.subr.bf16.mxu0 0
    %932 = vmatpush1.bf16.msra.mxu0 0
    %933 = vmatprep.subr.bf16.mxu0 0
    %934 = vmatpush1.bf16.msra.mxu0 0
    %935 = vmatprep.subr.bf16.mxu0 0
    %936 = vmatpush1.bf16.msra.mxu0 0
    %937 = vmatprep.subr.bf16.mxu0 0
    %938 = vmatpush1.bf16.msra.mxu0 0
    %939 = vmatprep.subr.bf16.mxu0 0
    %940 = vmatpush1.bf16.msra.mxu0 0
    %941 = vmatprep.subr.bf16.mxu0 0
    %942 = vmatpush1.bf16.msra.mxu0 0
    %943 = vmatprep.subr.bf16.mxu0 0
    %944 = vmatpush1.bf16.msra.mxu0 0
    %945 = vmatprep.subr.bf16.mxu0 0
    %946 = vmatpush1.bf16.msra.mxu0 0
    %947 = vmatprep.subr.bf16.mxu0 0
    %948 = vmatpush1.bf16.msra.mxu0 0
    %949 = vmatprep.mubr.bf16.mxu0 0
    %950 = vmatmul.mubr.bf16.gmra.mrb[0].mxu0 %v915
    %v951 = vpop.f32.mrb[0].mxu0
    %v952 = vadd.f32 %v900, %v951
    %v953 = vpop.f32.mrb[0].mxu0
    %v954 = vpop.f32.mrb[0].mxu0
    %v955 = vpop.f32.mrb[0].mxu0
    %956 = vdwg.mxu0
    %vm957 = vcmask 130048
    %958 = vst.msk [vmem:[#allocation7] sm:$0xff] %vm957, %v952
    // Predicated region
    $region62: #{subgraph_model_ml2_forward.1} parent=1 // pred_check
      _
    $region63: #{subgraph_model_ml2_forward.1} parent=1 // pred_check_branch
      %960 = sbr.rel (0) target = $region65
    $region64: #{subgraph_model_ml2_forward.1} parent=1 // pred_region
      %s962 = ssub.s32 128, 128
      %963 = vsyncadd [#allocation4], %s962
      %s965 = sshll.u32 [#allocation7], 4
      %s966 = int_to_ptr.vmem [resolvable:$true] %s965
      %968 = dma.vmem_to_hbm [thread:$0]  %s966, 128, %s13, [#allocation4]
    $region65: #{subgraph_model_ml2_forward.1} parent=1 // pred_fallthru
      _
    // Predicated region
    $region66: #{subgraph_model_ml2_forward.1} parent=1 // pred_check
      _
    $region67: #{subgraph_model_ml2_forward.1} parent=1 // pred_check_branch
      %970 = sbr.rel (0) target = $region69
    $region68: #{subgraph_model_ml2_forward.1} parent=1 // pred_region
      %971 = dma.done [#allocation4], 128
    $region69: #{subgraph_model_ml2_forward.1} parent=1 // pred_fallthru
      _
    %972 = vsyncpa [#allocation3], 1
    %973 = vsyncpa [#allocation6], 1
    %974 = vsyncpa [#allocation4], 1

</llo_original>
